<compile_context>
chip_gen: v6e
topology: v6e:2x2x1
jax: 0.10.0
libtpu: 0.0.40
codegen_flags: <defaults>
</compile_context>

<pallas_src>
import functools

import numpy as np
import jax
import jax.numpy as jnp
from jax.experimental import pallas as pl
from jax.experimental.pallas import tpu as pltpu


_LANE = 128
TM_DEFAULT = 512    # dst-tile rows
TK_DEFAULT = 1024   # src-tile cols (reduction)


def _round_up(x, m):
    return (x + m - 1) // m * m


def _pad2(a, rows, cols):
    r, c = a.shape
    if r == rows and c == cols:
        return a
    return jnp.pad(a, ((0, rows - r), (0, cols - c)))


def _vmem_budget_bytes():
    """Generation-aware VMEM budget: v5e/v6e have 128 MiB physical, v7x 64 MiB
    (32 MiB scoped default). Unknown -> conservative 32 MiB."""
    try:
        kind = jax.devices()[0].device_kind.lower()
    except Exception:
        kind = ""
    if "v5" in kind or "v6" in kind:
        return 96 * 1024 * 1024
    return 32 * 1024 * 1024


# -----------------------------------------------------------------------------
# Pallas kernel: one fused GraphConv layer.
# grid = (dst tile i, nonzero-src-tile slot j); scalar-prefetched src_ids/counts
# drive the adjacency / feature index maps (block-sparse tile skip).
# -----------------------------------------------------------------------------
def _gcn_layer_kernel(sids_ref, cnts_ref, h_ref, adj_ref, w_ref, ndst_ref,
                      b_ref, o_ref, acc_ref, *, apply_relu):
    i = pl.program_id(0)
    j = pl.program_id(1)

    @pl.when(j == 0)
    def _():
        acc_ref[...] = jnp.zeros_like(acc_ref)

    # only real (nonzero) adjacency tiles contribute; padded slots are skipped
    @pl.when(j < cnts_ref[i])
    def _():
        acc_ref[...] += jnp.dot(adj_ref[...], h_ref[...],
                                preferred_element_type=jnp.float32)

    @pl.when(j == pl.num_programs(1) - 1)
    def _():
        # project once per output tile (bf16 MXU); dst norm, bias, optional relu
        rst = jnp.dot(acc_ref[...].astype(jnp.bfloat16), w_ref[...],
                      preferred_element_type=jnp.float32)
        rst = rst * ndst_ref[...] + b_ref[...]
        if apply_relu:
            rst = jnp.maximum(rst, 0.0)
        o_ref[...] = rst.astype(o_ref.dtype)


# -----------------------------------------------------------------------------
# One-time per static graph: bf16 padded adjacency, degree norms, and the
# block-sparse tile schedule (nonzero src-tile ids per dst tile).
# -----------------------------------------------------------------------------
def prepare_block(adj, *, tm=TM_DEFAULT, tk=TK_DEFAULT):
    """norm='both' -> out_deg^-0.5 on src side, in_deg^-0.5 on dst side.
    Degrees clamped to min 1, matching DGL's degs.clamp(min=1)."""
    adj_np = np.asarray(adj, dtype=np.float32)
    n_dst, n_src = adj_np.shape

    out_deg = np.clip(adj_np.sum(axis=0), 1.0, None)   # per src node
    in_deg = np.clip(adj_np.sum(axis=1), 1.0, None)    # per dst node
    nsrc = np.power(out_deg, -0.5).reshape(-1, 1).astype(np.float32)
    ndst = np.power(in_deg, -0.5).reshape(-1, 1).astype(np.float32)

    n_dst_128 = _round_up(n_dst, _LANE)
    n_src_128 = _round_up(n_src, _LANE)
    tm = min(tm, n_dst_128)
    tk = min(tk, n_src_128)
    # keep >= 2 dst tiles when possible so the "parallel" dst axis can shard
    # across v7x's 2 TensorCores (v5e/v6e have a single TC; this is harmless).
    if n_dst_128 > _LANE and n_dst_128 <= tm:
        tm = _round_up(n_dst_128 // 2, _LANE)
    n_dst_p = _round_up(n_dst, tm)
    n_src_p = _round_up(n_src, tk)

    adj_pad = np.zeros((n_dst_p, n_src_p), dtype=np.float32)
    adj_pad[:n_dst, :n_src] = adj_np

    # block-sparse schedule: per dst tile, which (tm x tk) src tiles are nonzero
    nd_t, ns_t = n_dst_p // tm, n_src_p // tk
    tile_nz = adj_pad.reshape(nd_t, tm, ns_t, tk).any(axis=(1, 3))  # [nd_t, ns_t]
    counts = tile_nz.sum(axis=1).astype(np.int32)
    max_c = max(1, int(counts.max()) if counts.size else 1)
    src_ids = np.zeros((nd_t, max_c), dtype=np.int32)
    for i in range(nd_t):
        nz = np.nonzero(tile_nz[i])[0]
        src_ids[i, :len(nz)] = nz

    return {
        "adj": jnp.asarray(adj_pad, dtype=jnp.bfloat16),      # 0/1 exact in bf16
        "nsrc": jnp.asarray(np.pad(nsrc, ((0, n_src_p - n_src), (0, 0)))),
        "ndst": jnp.asarray(np.pad(ndst, ((0, n_dst_p - n_dst), (0, 0)))),
        "src_ids": jnp.asarray(src_ids.reshape(-1)),  # flat 1-D avoids 2-D SMEM padding
        "counts": jnp.asarray(counts),
        "max_c": max_c,
        "nnz_tiles": int(counts.sum()),
        "n_dst": n_dst, "n_src": n_src,
        "n_dst_p": n_dst_p, "n_src_p": n_src_p,
        "tm": tm, "tk": tk,
    }


# -----------------------------------------------------------------------------
# Once per forward: src-degree norm + bf16 cast + lane/row padding of features.
# Accepts raw (n_src, f) f32 features OR padded bf16 activations from the
# previous layer (keeps the padded layout between layers).
# -----------------------------------------------------------------------------
def prepare_features(block, x, n_valid_rows=None):
    n_src, n_src_p = block["n_src"], block["n_src_p"]
    if n_valid_rows is None:
        n_valid_rows = x.shape[0]
    assert n_valid_rows == n_src, (n_valid_rows, n_src)
    f_p = _round_up(x.shape[1], _LANE)
    if x.shape[0] > n_src_p:
        x = x[:n_src_p]
    x = _pad2(x, n_src_p, f_p)
    return (x.astype(jnp.float32) * block["nsrc"]).astype(jnp.bfloat16)


# -----------------------------------------------------------------------------
# One fused GraphConv(norm='both', weight=True, bias=True) forward pass
# -----------------------------------------------------------------------------
def graph_conv(block, h, w, b, *, activation=False, out_dtype=jnp.float32,
               unpad=True):
    adj, ndst = block["adj"], block["ndst"]
    n_dst, n_dst_p, n_src_p = block["n_dst"], block["n_dst_p"], block["n_src_p"]
    tm, tk, max_c = block["tm"], block["tk"], block["max_c"]
    in_f, out_f = w.shape
    f_in_p = _round_up(in_f, _LANE)
    f_out_p = _round_up(out_f, _LANE)
    assert h.shape == (n_src_p, f_in_p) and h.dtype == jnp.bfloat16, (h.shape, h.dtype)

    # bf16 projection weight (precision already bf16-limited by aggregation)
    w_p = _pad2(w.astype(jnp.float32), f_in_p, f_out_p).astype(jnp.bfloat16)
    b_p = _pad2(b.reshape(1, out_f).astype(jnp.float32), 1, f_out_p)

    nd_t = n_dst_p // tm
    grid = (nd_t, max_c)

    out_itemsize = jnp.dtype(out_dtype).itemsize
    vmem_needed = (2 * tm * tk * 2                # adjacency, double-buffered bf16
                   + 2 * tk * f_in_p * 2          # features, double-buffered bf16
                   + 2 * tm * f_out_p * out_itemsize
                   + f_in_p * f_out_p * 2         # W (bf16)
                   + tm * f_in_p * 4              # accumulator scratch
                   + (tm + f_out_p) * 4)          # norms + bias
    vmem_limit = max(32 * 1024 * 1024,
                     min(int(vmem_needed * 1.5), _vmem_budget_bytes()))

    nnz = block["nnz_tiles"]
    flops = 2.0 * nnz * tm * tk * f_in_p + 2.0 * n_dst_p * f_in_p * f_out_p
    bytes_accessed = (nd_t * max_c * (tm * tk * 2 + tk * f_in_p * 2)
                      + n_dst_p * f_out_p * out_itemsize
                      + f_in_p * f_out_p * 2 + n_dst_p * 4 + f_out_p * 4)

    kernel = functools.partial(_gcn_layer_kernel, apply_relu=bool(activation))

    out_p = pl.pallas_call(
        kernel,
        out_shape=jax.ShapeDtypeStruct((n_dst_p, f_out_p), out_dtype),
        grid_spec=pltpu.PrefetchScalarGridSpec(
            num_scalar_prefetch=2,
            grid=grid,
            in_specs=[
                # pre-normed bf16 features, gathered by nonzero src-tile id
                pl.BlockSpec((tk, f_in_p),
                             lambda i, j, sids, cnts: (sids[i * max_c + j], 0)),
                # bf16 adjacency, nonzero tiles only
                pl.BlockSpec((tm, tk),
                             lambda i, j, sids, cnts: (i, sids[i * max_c + j])),
                pl.BlockSpec((f_in_p, f_out_p), lambda i, j, sids, cnts: (0, 0)),  # W
                pl.BlockSpec((tm, 1), lambda i, j, sids, cnts: (i, 0)),            # dst norm
                pl.BlockSpec((1, f_out_p), lambda i, j, sids, cnts: (0, 0)),       # bias
            ],
            out_specs=pl.BlockSpec((tm, f_out_p), lambda i, j, sids, cnts: (i, 0)),
            scratch_shapes=[pltpu.VMEM((tm, f_in_p), jnp.float32)],
        ),
        compiler_params=pltpu.CompilerParams(
            dimension_semantics=("parallel", "arbitrary"),
            vmem_limit_bytes=vmem_limit,
        ),
        cost_estimate=pl.CostEstimate(
            flops=int(flops), transcendentals=0,
            bytes_accessed=int(bytes_accessed)),
    )(block["src_ids"], block["counts"], h, adj, w_p, ndst, b_p)

    if unpad:
        return out_p[:n_dst, :out_f]
    return out_p


# -----------------------------------------------------------------------------
# GCN module (n_layers == 2 configuration, dropout p = 0.0 -> identity)
# -----------------------------------------------------------------------------
def xavier_uniform(key, shape):
    fan_in, fan_out = shape
    bound = (6.0 / (fan_in + fan_out)) ** 0.5
    return jax.random.uniform(key, shape, jnp.float32, -bound, bound)


def init_gcn_params(key, in_feats, n_hidden, n_classes):
    k0, k1 = jax.random.split(key)
    return {
        "w0": xavier_uniform(k0, (in_feats, n_hidden)),
        "b0": jnp.zeros((n_hidden,), jnp.float32),
        "w1": xavier_uniform(k1, (n_hidden, n_classes)),
        "b1": jnp.zeros((n_classes,), jnp.float32),
    }


def gcn_forward(params, prepared_blocks, prev_layer_repeat, step, x, reuse_embedding):
    """Mirrors GCN.forward for n_layers=2.

    layer 0: GraphConvCacheReuse(in_feats, n_hidden, activation=relu)
    layer 1: GraphConv(n_hidden, n_classes, activation=None); dropout p=0.0 -> identity.
    Cache/reuse bookkeeping uses static Python index lists (host-side),
    matching the numpy-index semantics of the reference module.
    """
    block0, block1 = prepared_blocks
    n_hidden = params["w0"].shape[1]

    # ---- layer 0 (l == n_layers - 2): GraphConvCacheReuse ----
    h0 = prepare_features(block0, x)
    rst_p = graph_conv(block0, h0, params["w0"], params["b0"],
                       activation=True, out_dtype=jnp.bfloat16, unpad=False)
    n_rows = block0["n_dst"]

    reuse_indices = prev_layer_repeat[step][1]
    if len(reuse_indices) > 0:
        # row insertion changes the row count -> fall back to the unpadded path
        rst = rst_p[:n_rows, :n_hidden].astype(jnp.float32)
        full_len = n_rows + len(reuse_indices)
        reuse_set = set(reuse_indices)
        unprune = [i for i in range(full_len) if i not in reuse_set]
        full = jnp.zeros((full_len, n_hidden), jnp.float32)
        full = full.at[jnp.array(unprune)].set(rst)
        full = full.at[jnp.array(reuse_indices)].set(reuse_embedding.astype(jnp.float32))
        rst_for_next = full
        rst_for_cache = full
        n_rows = full_len
    else:
        # keep padded bf16 activations between layers (no f32 writeback / re-pad)
        rst_for_next = rst_p
        rst_for_cache = rst_p[:, :n_hidden]

    cache_embedding = jnp.zeros((0, n_hidden), jnp.float32)
    if step + 1 < len(prev_layer_repeat):
        cache_indices = prev_layer_repeat[step + 1][0]
        if len(cache_indices) > 0:
            cache_embedding = rst_for_cache[jnp.array(cache_indices)].astype(jnp.float32)

    # ---- layer 1: GraphConv (no activation) ----
    h1 = prepare_features(block1, rst_for_next, n_valid_rows=n_rows)
    out = graph_conv(block1, h1, params["w1"], params["b1"],
                     activation=False, out_dtype=jnp.float32, unpad=True)
    return out, cache_embedding


# -----------------------------------------------------------------------------
# Demo
# -----------------------------------------------------------------------------
if __name__ == "__main__":
    key = jax.random.PRNGKey(0)
    kx, ka0, ka1, kp = jax.random.split(key, 4)

    # small synthetic graph config
    N = 16          # nodes (src == dst for both blocks)
    in_feats = 8
    n_hidden = 32
    n_classes = 4

    # node features
    x = jax.random.normal(kx, (N, in_feats), jnp.float32)

    # two dense adjacency "blocks" with self-loops
    def make_adj(k):
        a = (jax.random.uniform(k, (N, N)) < 0.3).astype(jnp.float32)
        return jnp.maximum(a, jnp.eye(N, dtype=jnp.float32))

    blocks = [make_adj(ka0), make_adj(ka1)]
    # one-time per static graph: bf16 padded adjacency + degree norms + tile schedule
    prepared_blocks = [prepare_block(a) for a in blocks]

    # cache/reuse metadata: step 0 has no reuse; cache node indices for next step
    prev_layer_repeat = [[[], []], [[0, 3, 5], []]]
    step = 0
    reuse_embedding = jnp.zeros((0, n_hidden), jnp.float32)

    params = init_gcn_params(kp, in_feats, n_hidden, n_classes)

    out, cache_emb = gcn_forward(params, prepared_blocks, prev_layer_repeat,
                                 step, x, reuse_embedding)
    jax.block_until_ready(out)
    jax.block_until_ready(cache_emb)

    assert out.shape == (N, n_classes)
    assert cache_emb.shape == (3, n_hidden)
    print("KERNEL_OK")
</pallas_src>

<mosaic_0001>
module attributes {stable_mosaic.version = 11 : i64} {
  func.func @_gcn_layer_kernel(%arg0: i32, %arg1: i32, %arg2: memref<1xi32, #tpu.memory_space<smem>>, %arg3: memref<1xi32, #tpu.memory_space<smem>>, %arg4: memref<128x128xbf16, #tpu.memory_space<vmem>>, %arg5: memref<128x128xbf16, #tpu.memory_space<vmem>>, %arg6: memref<128x128xbf16, #tpu.memory_space<vmem>>, %arg7: memref<128x1xf32, #tpu.memory_space<vmem>>, %arg8: memref<1x128xf32, #tpu.memory_space<vmem>>, %arg9: memref<128x128xbf16, #tpu.memory_space<vmem>>, %arg10: memref<128x128xf32, #tpu.memory_space<vmem>>) attributes {dimension_semantics = [#tpu.dimension_semantics<parallel>, #tpu.dimension_semantics<arbitrary>], iteration_bounds = array<i64: 1, 1>, scalar_prefetch = 2 : i64, scratch_operands = 1 : i64, tpu.core_type = #tpu.core_type<tc>, window_params = [{transform_indices = @transform_0, window_bounds = array<i64: 128, 128>}, {transform_indices = @transform_1, window_bounds = array<i64: 128, 128>}, {pipeline_mode = #tpu.pipeline_mode<synchronous>, transform_indices = @transform_2, window_bounds = array<i64: 128, 128>}, {transform_indices = @transform_3, window_bounds = array<i64: 128, 1>}, {pipeline_mode = #tpu.pipeline_mode<synchronous>, transform_indices = @transform_4, window_bounds = array<i64: 1, 128>}, {transform_indices = @transform_5, window_bounds = array<i64: 128, 128>}]} {
    %c0_i32 = arith.constant 0 : i32
    %0 = arith.cmpi eq, %arg1, %c0_i32 : i32
    %1 = arith.extui %0 : i1 to i32
    %c0_i32_0 = arith.constant 0 : i32
    %2 = arith.cmpi ne, %1, %c0_i32_0 : i32
    scf.if %2 {
      %cst = arith.constant 0.000000e+00 : f32
      %11 = vector.broadcast %cst : f32 to vector<128x128xf32>
      %c0 = arith.constant 0 : index
      %c0_4 = arith.constant 0 : index
      %12 = vector.load %arg10[%c0, %c0_4] : memref<128x128xf32, #tpu.memory_space<vmem>>, vector<128x128xf32>
      tpu.vector_store %arg10[%c0, %c0_4], %11 {strides = array<i32>} : memref<128x128xf32, #tpu.memory_space<vmem>>, vector<128x128xf32>,
    } else {
    }
    %3 = arith.index_cast %arg0 : i32 to index
    %4 = memref.load %arg3[%3] : memref<1xi32, #tpu.memory_space<smem>>
    %5 = arith.cmpi slt, %arg1, %4 : i32
    %6 = arith.extui %5 : i1 to i32
    %c0_i32_1 = arith.constant 0 : i32
    %7 = arith.cmpi ne, %6, %c0_i32_1 : i32
    scf.if %7 {
      %c0 = arith.constant 0 : index
      %c0_4 = arith.constant 0 : index
      %11 = vector.load %arg10[%c0, %c0_4] : memref<128x128xf32, #tpu.memory_space<vmem>>, vector<128x128xf32>
      %c0_5 = arith.constant 0 : index
      %c0_6 = arith.constant 0 : index
      %12 = vector.load %arg5[%c0_5, %c0_6] : memref<128x128xbf16, #tpu.memory_space<vmem>>, vector<128x128xbf16>
      %c0_7 = arith.constant 0 : index
      %c0_8 = arith.constant 0 : index
      %13 = vector.load %arg4[%c0_7, %c0_8] : memref<128x128xbf16, #tpu.memory_space<vmem>>, vector<128x128xbf16>
      %cst = arith.constant dense<0.000000e+00> : vector<128x128xf32>
      %14 = tpu.matmul %12, %13, %cst {dimension_numbers = #tpu.dot_dimension_numbers<[1], [0], [0], [1], [0, 0, 1, 1], [], []>} : vector<128x128xbf16>, vector<128x128xbf16>, vector<128x128xf32> -> vector<128x128xf32>
      %15 = arith.addf %11, %14 : vector<128x128xf32>
      %c0_9 = arith.constant 0 : index
      %c0_10 = arith.constant 0 : index
      %16 = vector.load %arg10[%c0_9, %c0_10] : memref<128x128xf32, #tpu.memory_space<vmem>>, vector<128x128xf32>
      tpu.vector_store %arg10[%c0_9, %c0_10], %15 {strides = array<i32>} : memref<128x128xf32, #tpu.memory_space<vmem>>, vector<128x128xf32>,
    } else {
    }
    %c0_i32_2 = arith.constant 0 : i32
    %8 = arith.cmpi eq, %arg1, %c0_i32_2 : i32
    %9 = arith.extui %8 : i1 to i32
    %c0_i32_3 = arith.constant 0 : i32
    %10 = arith.cmpi ne, %9, %c0_i32_3 : i32
    scf.if %10 {
      %c0 = arith.constant 0 : index
      %c0_4 = arith.constant 0 : index
      %11 = vector.load %arg10[%c0, %c0_4] : memref<128x128xf32, #tpu.memory_space<vmem>>, vector<128x128xf32>
      %12 = arith.truncf %11 : vector<128x128xf32> to vector<128x128xbf16>
      %c0_5 = arith.constant 0 : index
      %c0_6 = arith.constant 0 : index
      %13 = vector.load %arg6[%c0_5, %c0_6] : memref<128x128xbf16, #tpu.memory_space<vmem>>, vector<128x128xbf16>
      %cst = arith.constant dense<0.000000e+00> : vector<128x128xf32>
      %14 = tpu.matmul %12, %13, %cst {dimension_numbers = #tpu.dot_dimension_numbers<[1], [0], [0], [1], [0, 0, 1, 1], [], []>} : vector<128x128xbf16>, vector<128x128xbf16>, vector<128x128xf32> -> vector<128x128xf32>
      %c0_7 = arith.constant 0 : index
      %c0_8 = arith.constant 0 : index
      %15 = vector.load %arg7[%c0_7, %c0_8] : memref<128x1xf32, #tpu.memory_space<vmem>>, vector<128x1xf32>
      %16 = vector.broadcast %15 : vector<128x1xf32> to vector<128x128xf32>
      %17 = arith.mulf %14, %16 : vector<128x128xf32>
      %c0_9 = arith.constant 0 : index
      %c0_10 = arith.constant 0 : index
      %18 = vector.load %arg8[%c0_9, %c0_10] : memref<1x128xf32, #tpu.memory_space<vmem>>, vector<1x128xf32>
      %19 = vector.broadcast %18 : vector<1x128xf32> to vector<128x128xf32>
      %20 = arith.addf %17, %19 : vector<128x128xf32>
      %cst_11 = arith.constant 0.000000e+00 : f32
      %21 = vector.broadcast %cst_11 : f32 to vector<128x128xf32>
      %22 = arith.maximumf %20, %21 : vector<128x128xf32>
      %23 = arith.truncf %22 : vector<128x128xf32> to vector<128x128xbf16>
      %c0_12 = arith.constant 0 : index
      %c0_13 = arith.constant 0 : index
      %24 = vector.load %arg9[%c0_12, %c0_13] : memref<128x128xbf16, #tpu.memory_space<vmem>>, vector<128x128xbf16>
      tpu.vector_store %arg9[%c0_12, %c0_13], %23 {strides = array<i32>} : memref<128x128xbf16, #tpu.memory_space<vmem>>, vector<128x128xbf16>,
    } else {
    }
    return
  }
  func.func @transform_0(%arg0: i32, %arg1: i32, %arg2: memref<1xi32, #tpu.memory_space<smem>>, %arg3: memref<1xi32, #tpu.memory_space<smem>>) -> (i32, i32) {
    %c1_i32 = arith.constant 1 : i32
    %0 = arith.muli %arg0, %c1_i32 : i32
    %1 = arith.addi %0, %arg1 : i32
    %2 = arith.index_cast %1 : i32 to index
    %3 = memref.load %arg2[%2] : memref<1xi32, #tpu.memory_space<smem>>
    %c0_i32 = arith.constant 0 : i32
    %c0_i32_0 = arith.constant 0 : i32
    return %3, %c0_i32 : i32, i32
  }
  func.func @transform_1(%arg0: i32, %arg1: i32, %arg2: memref<1xi32, #tpu.memory_space<smem>>, %arg3: memref<1xi32, #tpu.memory_space<smem>>) -> (i32, i32) {
    %c1_i32 = arith.constant 1 : i32
    %0 = arith.muli %arg0, %c1_i32 : i32
    %1 = arith.addi %0, %arg1 : i32
    %2 = arith.index_cast %1 : i32 to index
    %3 = memref.load %arg2[%2] : memref<1xi32, #tpu.memory_space<smem>>
    %c0_i32 = arith.constant 0 : i32
    return %arg0, %3 : i32, i32
  }
  func.func @transform_2(%arg0: i32, %arg1: i32, %arg2: memref<1xi32, #tpu.memory_space<smem>>, %arg3: memref<1xi32, #tpu.memory_space<smem>>) -> (i32, i32) {
    %c0_i32 = arith.constant 0 : i32
    %c0_i32_0 = arith.constant 0 : i32
    %c0_i32_1 = arith.constant 0 : i32
    return %c0_i32, %c0_i32_0 : i32, i32
  }
  func.func @transform_3(%arg0: i32, %arg1: i32, %arg2: memref<1xi32, #tpu.memory_space<smem>>, %arg3: memref<1xi32, #tpu.memory_space<smem>>) -> (i32, i32) {
    %c0_i32 = arith.constant 0 : i32
    %c0_i32_0 = arith.constant 0 : i32
    return %arg0, %c0_i32 : i32, i32
  }
  func.func @transform_4(%arg0: i32, %arg1: i32, %arg2: memref<1xi32, #tpu.memory_space<smem>>, %arg3: memref<1xi32, #tpu.memory_space<smem>>) -> (i32, i32) {
    %c0_i32 = arith.constant 0 : i32
    %c0_i32_0 = arith.constant 0 : i32
    %c0_i32_1 = arith.constant 0 : i32
    return %c0_i32, %c0_i32_0 : i32, i32
  }
  func.func @transform_5(%arg0: i32, %arg1: i32, %arg2: memref<1xi32, #tpu.memory_space<smem>>, %arg3: memref<1xi32, #tpu.memory_space<smem>>) -> (i32, i32) {
    %c0_i32 = arith.constant 0 : i32
    %c0_i32_0 = arith.constant 0 : i32
    return %arg0, %c0_i32 : i32, i32
  }
}

</mosaic_0001>

<llo_original>
// kernel: tpu_custom_call.1
$region0: #{tpu_custom_call.1}
  #allocation0 [shape = 'u32[]', space=smem, size = 0x4, offset = 0x4, fixed_abs, tag = 'smem constant byte address 0x4 - core index']
  #allocation1 [shape = 'u32[144,128]{1,0:T(1,128)}', space=vmem, size = 0x12000, scoped, tag = 'internal scratch']
  #allocation2 [shape = 'f32[128,128]{1,0:T(8,128)}', space=vmem, size = 0x10000, scoped, tag = 'scratch operand']
  #allocation3 [shape = 's32[1]{0}', space=sflag, size = 0x4, scoped, tag = 'scoped memory for tpu_custom_call.1']
  #allocation4 [shape = 's32[1]{0:T(128)S(6)}', space=smem, size = 0x200, scoped, tag = 'prefetched SMEM operand 0']
  #allocation5 [shape = 's32[1]{0:T(128)S(6)}', space=smem, size = 0x200, scoped, tag = 'prefetched SMEM operand 1']
  %s0 = inlined_call_operand.<no memory space> [shape: s32[1], index: 0, kind: input, shape index: {}]
  %s1 = inlined_call_operand.<no memory space> [shape: s32[1], index: 1, kind: input, shape index: {}]
  %s2 = inlined_call_operand.vmem [shape: bf16[128,128], index: 2, kind: input, shape index: {}]
  %s3 = inlined_call_operand.vmem [shape: bf16[128,128], index: 3, kind: input, shape index: {}]
  %s4 = inlined_call_operand.hbm [shape: bf16[128,128], index: 4, kind: input, shape index: {}]
  %s5 = inlined_call_operand.vmem [shape: f32[128,1], index: 5, kind: input, shape index: {}]
  %s6 = inlined_call_operand.vmem [shape: f32[1,128], index: 6, kind: input, shape index: {}]
  %s7 = inlined_call_operand.hbm [shape: bf16[128,128], index: 7, kind: output, shape index: {}]
  %s8 = sld [smem:[#allocation0]]
  $region46: #{tpu_custom_call.1} parent=0
    _
  %s10 = ssub.s32 1, %s8
  %s11 = scalar_select 0, %s10, %s8
  %12 = sst [smem:[#allocation4]] %s0
  %13 = sst [smem:[#allocation5]] %s1
  $region1: #{tpu_custom_call.1} parent=0
    #allocation6 [shape = 'u8[32768]{0}', space=vmem, size = 0x8000, scoped, tag = 'input window, operand 4, single buffered']
    #allocation7 [shape = 's32[1]{0}', space=sflag, size = 0x4, scoped, tag = 'scoped memory for tpu_custom_call.1']
    #allocation8 [shape = 's32[1]{0}', space=sflag, size = 0x4, scoped, tag = 'scoped memory for tpu_custom_call.1']
    #allocation9 [shape = 'u8[32768]{0}', space=vmem, size = 0x8000, scoped, tag = 'output window, operand 0, single buffered']
    %14 = vsyncpa [#allocation7], 0
    %15 = vsyncpa [#allocation8], 0
    // Predicated region
    $region2: #{tpu_custom_call.1} parent=1 // pred_check
      _
    $region3: #{tpu_custom_call.1} parent=1 // pred_check_branch
      %17 = sbr.rel (0) target = $region5
    $region4: #{tpu_custom_call.1} parent=1 // pred_region
      %s18 = sadd.s32 0, 0
      %s19 = sld [smem:[#allocation4 + %s18]]
      %s20 = smul.u32 16, %s19
      %p21 = scmp.lt.s32.totalorder %s20, 15
      %s22 = scalar_select %p21, %s20, 15
      %s23 = smul.addr %s22, 4
      %s24 = scalar_lea.vmem %s2, %s23
      %s25 = sadd.s32 0, 0
      %s26 = sld [smem:[#allocation4 + %s25]]
      %s27 = smul.u32 16, %s26
    $region5: #{tpu_custom_call.1} parent=1 // pred_fallthru
      _
    // Predicated region
    $region6: #{tpu_custom_call.1} parent=1 // pred_check
      _
    $region7: #{tpu_custom_call.1} parent=1 // pred_check_branch
      %29 = sbr.rel (0) target = $region9
    $region8: #{tpu_custom_call.1} parent=1 // pred_region
      %s30 = sadd.s32 0, 0
      %s31 = sld [smem:[#allocation4 + %s30]]
      %p32 = scmp.lt.s32.totalorder %s31, 0
      %s33 = scalar_select %p32, %s31, 0
      %s34 = smul.addr %s33, 4
      %s35 = scalar_lea.vmem %s3, %s34
      %s36 = sadd.s32 0, 0
      %s37 = sld [smem:[#allocation4 + %s36]]
    $region9: #{tpu_custom_call.1} parent=1 // pred_fallthru
      _
    // Predicated region
    $region10: #{tpu_custom_call.1} parent=1 // pred_check
      _
    $region11: #{tpu_custom_call.1} parent=1 // pred_check_branch
      %39 = sbr.rel (0) target = $region13
    $region12: #{tpu_custom_call.1} parent=1 // pred_region
      %s41 = ssub.s32 1024, 1024
      %42 = vsyncadd [#allocation7], %s41
      %s43 = sshll.u32 [#allocation6], 4
      %s44 = int_to_ptr.vmem [resolvable:$true] %s43
      %49 = dma.hbm_to_vmem [thread:$0]  %s4, 1024, %s44, [#allocation7], 64, 64, 4
    $region13: #{tpu_custom_call.1} parent=1 // pred_fallthru
      _
    // Predicated region
    $region14: #{tpu_custom_call.1} parent=1 // pred_check
      _
    $region15: #{tpu_custom_call.1} parent=1 // pred_check_branch
      %51 = sbr.rel (0) target = $region17
    $region16: #{tpu_custom_call.1} parent=1 // pred_region
      _
    $region17: #{tpu_custom_call.1} parent=1 // pred_fallthru
      _
    // Predicated region
    $region18: #{tpu_custom_call.1} parent=1 // pred_check
      _
    $region19: #{tpu_custom_call.1} parent=1 // pred_check_branch
      %53 = sbr.rel (0) target = $region21
    $region20: #{tpu_custom_call.1} parent=1 // pred_region
      _
    $region21: #{tpu_custom_call.1} parent=1 // pred_fallthru
      _
    // Predicated region
    $region22: #{tpu_custom_call.1} parent=1 // pred_check
      _
    $region23: #{tpu_custom_call.1} parent=1 // pred_check_branch
      %55 = sbr.rel (0) target = $region25
    $region24: #{tpu_custom_call.1} parent=1 // pred_region
      %56 = dma.done [#allocation7], 1024
    $region25: #{tpu_custom_call.1} parent=1 // pred_fallthru
      _
    %s57 = sadd.s32 0, 0
    %s58 = sld [smem:[#allocation4 + %s57]]
    %s59 = smul.u32 16, %s58
    %p60 = scmp.lt.s32.totalorder %s59, 15
    %s61 = scalar_select %p60, %s59, 15
    %s62 = smul.addr %s61, 4
    %s63 = scalar_lea.vmem %s2, %s62
    %s64 = sadd.s32 0, 0
    %s65 = sld [smem:[#allocation4 + %s64]]
    %p66 = scmp.lt.s32.totalorder %s65, 0
    %s67 = scalar_select %p66, %s65, 0
    %s68 = smul.addr %s67, 4
    %s69 = scalar_lea.vmem %s3, %s68
    %s70 = sadd.s32 0, 0
    %s71 = sld [smem:[#allocation4 + %s70]]
    %s72 = smul.u32 16, %s71
    %p73 = scmp.lt.s32.totalorder %s72, 15
    %s74 = scalar_select %p73, %s72, 15
    %s75 = smul.addr %s74, 4
    %s76 = scalar_lea.vmem %s2, %s75
    %s77 = sadd.s32 0, 0
    %s78 = sld [smem:[#allocation4 + %s77]]
    %s79 = smul.u32 16, %s78
    %s80 = sadd.s32 0, 0
    %s81 = sld [smem:[#allocation4 + %s80]]
    %p82 = scmp.lt.s32.totalorder %s81, 0
    %s83 = scalar_select %p82, %s81, 0
    %s84 = smul.addr %s83, 4
    %s85 = scalar_lea.vmem %s3, %s84
    %s86 = sadd.s32 0, 0
    %s87 = sld [smem:[#allocation4 + %s86]]
    %p89 = scmp.eq.s32.totalorder 0, 0
    // Predicated region
    $region26: #{tpu_custom_call.1} parent=1 // pred_check
      %p90 = pneg %p89
    $region27: #{tpu_custom_call.1} parent=1 // pred_check_branch
      %92 = sbr.rel (%p90) target = $region29
    $region28: #{tpu_custom_call.1} parent=1 // pred_region
      %93 = vst [vmem:[#allocation2] sm:$0xff] 0.0
      %94 = vst [vmem:[#allocation2 + $0x8] sm:$0xff] 0.0
      %95 = vst [vmem:[#allocation2 + $0x10] sm:$0xff] 0.0
      %96 = vst [vmem:[#allocation2 + $0x18] sm:$0xff] 0.0
      %97 = vst [vmem:[#allocation2 + $0x20] sm:$0xff] 0.0
      %98 = vst [vmem:[#allocation2 + $0x28] sm:$0xff] 0.0
      %99 = vst [vmem:[#allocation2 + $0x30] sm:$0xff] 0.0
      %100 = vst [vmem:[#allocation2 + $0x38] sm:$0xff] 0.0
      %101 = vst [vmem:[#allocation2 + $0x40] sm:$0xff] 0.0
      %102 = vst [vmem:[#allocation2 + $0x48] sm:$0xff] 0.0
      %103 = vst [vmem:[#allocation2 + $0x50] sm:$0xff] 0.0
      %104 = vst [vmem:[#allocation2 + $0x58] sm:$0xff] 0.0
      %105 = vst [vmem:[#allocation2 + $0x60] sm:$0xff] 0.0
      %106 = vst [vmem:[#allocation2 + $0x68] sm:$0xff] 0.0
      %107 = vst [vmem:[#allocation2 + $0x70] sm:$0xff] 0.0
      %108 = vst [vmem:[#allocation2 + $0x78] sm:$0xff] 0.0
    $region29: #{tpu_custom_call.1} parent=1 // pred_fallthru
      _
    %s109 = sld [smem:[#allocation5]]
    %p110 = scmp.lt.s32.totalorder 0, %s109
    // Predicated region
    $region30: #{tpu_custom_call.1} parent=1 // pred_check
      %p111 = pneg %p110
    $region31: #{tpu_custom_call.1} parent=1 // pred_check_branch
      %113 = sbr.rel (%p111) target = $region33
    $region32: #{tpu_custom_call.1} parent=1 // pred_region
      %v114 = vld [vmem:[#allocation2] sm:$0xff]
      %v115 = vld [vmem:[#allocation2 + $0x8] sm:$0xff]
      %v116 = vld [vmem:[#allocation2 + $0x10] sm:$0xff]
      %v117 = vld [vmem:[#allocation2 + $0x18] sm:$0xff]
      %v118 = vld [vmem:[#allocation2 + $0x20] sm:$0xff]
      %v119 = vld [vmem:[#allocation2 + $0x28] sm:$0xff]
      %v120 = vld [vmem:[#allocation2 + $0x30] sm:$0xff]
      %v121 = vld [vmem:[#allocation2 + $0x38] sm:$0xff]
      %v122 = vld [vmem:[#allocation2 + $0x40] sm:$0xff]
      %v123 = vld [vmem:[#allocation2 + $0x48] sm:$0xff]
      %v124 = vld [vmem:[#allocation2 + $0x50] sm:$0xff]
      %v125 = vld [vmem:[#allocation2 + $0x58] sm:$0xff]
      %v126 = vld [vmem:[#allocation2 + $0x60] sm:$0xff]
      %v127 = vld [vmem:[#allocation2 + $0x68] sm:$0xff]
      %v128 = vld [vmem:[#allocation2 + $0x70] sm:$0xff]
      %v129 = vld [vmem:[#allocation2 + $0x78] sm:$0xff]
      %v130 = vld [vmem:[%s85] sm:$0xf]
      %v131 = vld [vmem:[%s85 + $0x4] sm:$0xf]
      %v132 = vld [vmem:[%s85 + $0x8] sm:$0xf]
      %v133 = vld [vmem:[%s85 + $0xc] sm:$0xf]
      %v134 = vld [vmem:[%s85 + $0x10] sm:$0xf]
      %v135 = vld [vmem:[%s85 + $0x14] sm:$0xf]
      %v136 = vld [vmem:[%s85 + $0x18] sm:$0xf]
      %v137 = vld [vmem:[%s85 + $0x1c] sm:$0xf]
      %v138 = vld [vmem:[%s85 + $0x20] sm:$0xf]
      %v139 = vld [vmem:[%s85 + $0x24] sm:$0xf]
      %v140 = vld [vmem:[%s85 + $0x28] sm:$0xf]
      %v141 = vld [vmem:[%s85 + $0x2c] sm:$0xf]
      %v142 = vld [vmem:[%s85 + $0x30] sm:$0xf]
      %v143 = vld [vmem:[%s85 + $0x34] sm:$0xf]
      %v144 = vld [vmem:[%s85 + $0x38] sm:$0xf]
      %v145 = vld [vmem:[%s85 + $0x3c] sm:$0xf]
      %v146 = vld [vmem:[%s76] sm:$0xf]
      %v147 = vld [vmem:[%s76 + $0x4] sm:$0xf]
      %v148 = vld [vmem:[%s76 + $0x8] sm:$0xf]
      %v149 = vld [vmem:[%s76 + $0xc] sm:$0xf]
      %v150 = vld [vmem:[%s76 + $0x10] sm:$0xf]
      %v151 = vld [vmem:[%s76 + $0x14] sm:$0xf]
      %v152 = vld [vmem:[%s76 + $0x18] sm:$0xf]
      %v153 = vld [vmem:[%s76 + $0x1c] sm:$0xf]
      %v154 = vld [vmem:[%s76 + $0x20] sm:$0xf]
      %v155 = vld [vmem:[%s76 + $0x24] sm:$0xf]
      %v156 = vld [vmem:[%s76 + $0x28] sm:$0xf]
      %v157 = vld [vmem:[%s76 + $0x2c] sm:$0xf]
      %v158 = vld [vmem:[%s76 + $0x30] sm:$0xf]
      %v159 = vld [vmem:[%s76 + $0x34] sm:$0xf]
      %v160 = vld [vmem:[%s76 + $0x38] sm:$0xf]
      %v161 = vld [vmem:[%s76 + $0x3c] sm:$0xf]
      %v178 = vunpack.c.l.b16 %v130
      %v179 = vunpack.c.l.b16 %v131
      %v180 = vunpack.c.l.b16 %v132
      %v181 = vunpack.c.l.b16 %v133
      %v182 = vunpack.c.l.b16 %v134
      %v183 = vunpack.c.l.b16 %v135
      %v184 = vunpack.c.l.b16 %v136
      %v185 = vunpack.c.l.b16 %v137
      %v186 = vunpack.c.l.b16 %v138
      %v187 = vunpack.c.l.b16 %v139
      %v188 = vunpack.c.l.b16 %v140
      %v189 = vunpack.c.l.b16 %v141
      %v190 = vunpack.c.l.b16 %v142
      %v191 = vunpack.c.l.b16 %v143
      %v192 = vunpack.c.l.b16 %v144
      %v193 = vunpack.c.l.b16 %v145
      %v194 = vpack.c.b16 %v179, %v178
      %v195 = vpack.c.b16 %v181, %v180
      %v196 = vpack.c.b16 %v183, %v182
      %v197 = vpack.c.b16 %v185, %v184
      %v198 = vpack.c.b16 %v187, %v186
      %v199 = vpack.c.b16 %v189, %v188
      %v200 = vpack.c.b16 %v191, %v190
      %v201 = vpack.c.b16 %v193, %v192
      %v226 = vunpack.c.l.b16 %v146
      %v227 = vunpack.c.l.b16 %v147
      %v228 = vunpack.c.l.b16 %v148
      %v229 = vunpack.c.l.b16 %v149
      %v230 = vunpack.c.l.b16 %v150
      %v231 = vunpack.c.l.b16 %v151
      %v232 = vunpack.c.l.b16 %v152
      %v233 = vunpack.c.l.b16 %v153
      %v234 = vunpack.c.l.b16 %v154
      %v235 = vunpack.c.l.b16 %v155
      %v236 = vunpack.c.l.b16 %v156
      %v237 = vunpack.c.l.b16 %v157
      %v238 = vunpack.c.l.b16 %v158
      %v239 = vunpack.c.l.b16 %v159
      %v240 = vunpack.c.l.b16 %v160
      %v241 = vunpack.c.l.b16 %v161
      %v242 = vpack.c.b16 %v227, %v226
      %v243 = vpack.c.b16 %v229, %v228
      %v244 = vpack.c.b16 %v231, %v230
      %v245 = vpack.c.b16 %v233, %v232
      %v246 = vpack.c.b16 %v235, %v234
      %v247 = vpack.c.b16 %v237, %v236
      %v248 = vpack.c.b16 %v239, %v238
      %v249 = vpack.c.b16 %v241, %v240
      %258 = vmatprep.subr.bf16.mxu0 0
      %259 = vmatpush1.bf16.msra.mxu0 %v249
      %260 = vmatprep.subr.bf16.mxu0 0
      %261 = vmatpush1.bf16.msra.mxu0 %v248
      %262 = vmatprep.subr.bf16.mxu0 0
      %263 = vmatpush1.bf16.msra.mxu0 %v247
      %264 = vmatprep.subr.bf16.mxu0 0
      %265 = vmatpush1.bf16.msra.mxu0 %v246
      %266 = vmatprep.subr.bf16.mxu0 0
      %267 = vmatpush1.bf16.msra.mxu0 %v245
      %268 = vmatprep.subr.bf16.mxu0 0
      %269 = vmatpush1.bf16.msra.mxu0 %v244
      %270 = vmatprep.subr.bf16.mxu0 0
      %271 = vmatpush1.bf16.msra.mxu0 %v243
      %272 = vmatprep.subr.bf16.mxu0 0
      %273 = vmatpush1.bf16.msra.mxu0 %v242
      %274 = vmatprep.subr.bf16.mxu0 0
      %275 = vmatpush2.bf16.msra.mxu0 0
      %276 = vmatprep.subr.bf16.mxu0 0
      %277 = vmatpush2.bf16.msra.mxu0 0
      %278 = vmatprep.subr.bf16.mxu0 0
      %279 = vmatpush2.bf16.msra.mxu0 0
      %280 = vmatprep.subr.bf16.mxu0 0
      %281 = vmatpush2.bf16.msra.mxu0 0
      %282 = vmatprep.subr.bf16.mxu0 0
      %283 = vmatpush2.bf16.msra.mxu0 0
      %284 = vmatprep.subr.bf16.mxu0 0
      %285 = vmatpush2.bf16.msra.mxu0 0
      %286 = vmatprep.subr.bf16.mxu0 0
      %287 = vmatpush2.bf16.msra.mxu0 0
      %288 = vmatprep.subr.bf16.mxu0 0
      %289 = vmatpush2.bf16.msra.mxu0 0
      %290 = vmatprep.mubr.bf16.mxu0 0
      %291 = vmatmul.mubr.bf16.gmra.mxu0 %v194
      %v292 = vpop.f32.mrf.mxu0
      %v293 = vadd.f32 0.0, %v292
      %v294 = vpop.f32.mrf.mxu0
      %v295 = vpop.f32.mrf.mxu0
      %v296 = vadd.f32 0.0, %v295
      %v297 = vpop.f32.mrf.mxu0
      %298 = vmatprep.mubr.bf16.mxu0 0
      %299 = vmatmul.mubr.bf16.gmra.mxu0 %v195
      %v300 = vpop.f32.mrf.mxu0
      %v301 = vadd.f32 0.0, %v300
      %v302 = vpop.f32.mrf.mxu0
      %v303 = vpop.f32.mrf.mxu0
      %v304 = vadd.f32 0.0, %v303
      %v305 = vpop.f32.mrf.mxu0
      %306 = vmatprep.mubr.bf16.mxu0 0
      %307 = vmatmul.mubr.bf16.gmra.mxu0 %v196
      %v308 = vpop.f32.mrf.mxu0
      %v309 = vadd.f32 0.0, %v308
      %v310 = vpop.f32.mrf.mxu0
      %v311 = vpop.f32.mrf.mxu0
      %v312 = vadd.f32 0.0, %v311
      %v313 = vpop.f32.mrf.mxu0
      %314 = vmatprep.mubr.bf16.mxu0 0
      %315 = vmatmul.mubr.bf16.gmra.mxu0 %v197
      %v316 = vpop.f32.mrf.mxu0
      %v317 = vadd.f32 0.0, %v316
      %v318 = vpop.f32.mrf.mxu0
      %v319 = vpop.f32.mrf.mxu0
      %v320 = vadd.f32 0.0, %v319
      %v321 = vpop.f32.mrf.mxu0
      %322 = vmatprep.mubr.bf16.mxu0 0
      %323 = vmatmul.mubr.bf16.gmra.mxu0 %v198
      %v324 = vpop.f32.mrf.mxu0
      %v325 = vadd.f32 0.0, %v324
      %v326 = vpop.f32.mrf.mxu0
      %v327 = vpop.f32.mrf.mxu0
      %v328 = vadd.f32 0.0, %v327
      %v329 = vpop.f32.mrf.mxu0
      %330 = vmatprep.mubr.bf16.mxu0 0
      %331 = vmatmul.mubr.bf16.gmra.mxu0 %v199
      %v332 = vpop.f32.mrf.mxu0
      %v333 = vadd.f32 0.0, %v332
      %v334 = vpop.f32.mrf.mxu0
      %v335 = vpop.f32.mrf.mxu0
      %v336 = vadd.f32 0.0, %v335
      %v337 = vpop.f32.mrf.mxu0
      %338 = vmatprep.mubr.bf16.mxu0 0
      %339 = vmatmul.mubr.bf16.gmra.mxu0 %v200
      %v340 = vpop.f32.mrf.mxu0
      %v341 = vadd.f32 0.0, %v340
      %v342 = vpop.f32.mrf.mxu0
      %v343 = vpop.f32.mrf.mxu0
      %v344 = vadd.f32 0.0, %v343
      %v345 = vpop.f32.mrf.mxu0
      %346 = vmatprep.mubr.bf16.mxu0 0
      %347 = vmatmul.mubr.bf16.gmra.mxu0 %v201
      %v348 = vpop.f32.mrf.mxu0
      %v349 = vadd.f32 0.0, %v348
      %v350 = vpop.f32.mrf.mxu0
      %v351 = vpop.f32.mrf.mxu0
      %v352 = vadd.f32 0.0, %v351
      %v353 = vpop.f32.mrf.mxu0
      %354 = vdwg.mxu0
      %v355 = vadd.f32 %v114, %v293
      %v356 = vadd.f32 %v115, %v296
      %v357 = vadd.f32 %v116, %v301
      %v358 = vadd.f32 %v117, %v304
      %v359 = vadd.f32 %v118, %v309
      %v360 = vadd.f32 %v119, %v312
      %v361 = vadd.f32 %v120, %v317
      %v362 = vadd.f32 %v121, %v320
      %v363 = vadd.f32 %v122, %v325
      %v364 = vadd.f32 %v123, %v328
      %v365 = vadd.f32 %v124, %v333
      %v366 = vadd.f32 %v125, %v336
      %v367 = vadd.f32 %v126, %v341
      %v368 = vadd.f32 %v127, %v344
      %v369 = vadd.f32 %v128, %v349
      %v370 = vadd.f32 %v129, %v352
      %371 = vst [vmem:[#allocation2] sm:$0xff] %v355
      %372 = vst [vmem:[#allocation2 + $0x8] sm:$0xff] %v356
      %373 = vst [vmem:[#allocation2 + $0x10] sm:$0xff] %v357
      %374 = vst [vmem:[#allocation2 + $0x18] sm:$0xff] %v358
      %375 = vst [vmem:[#allocation2 + $0x20] sm:$0xff] %v359
      %376 = vst [vmem:[#allocation2 + $0x28] sm:$0xff] %v360
      %377 = vst [vmem:[#allocation2 + $0x30] sm:$0xff] %v361
      %378 = vst [vmem:[#allocation2 + $0x38] sm:$0xff] %v362
      %379 = vst [vmem:[#allocation2 + $0x40] sm:$0xff] %v363
      %380 = vst [vmem:[#allocation2 + $0x48] sm:$0xff] %v364
      %381 = vst [vmem:[#allocation2 + $0x50] sm:$0xff] %v365
      %382 = vst [vmem:[#allocation2 + $0x58] sm:$0xff] %v366
      %383 = vst [vmem:[#allocation2 + $0x60] sm:$0xff] %v367
      %384 = vst [vmem:[#allocation2 + $0x68] sm:$0xff] %v368
      %385 = vst [vmem:[#allocation2 + $0x70] sm:$0xff] %v369
      %386 = vst [vmem:[#allocation2 + $0x78] sm:$0xff] %v370
    $region33: #{tpu_custom_call.1} parent=1 // pred_fallthru
      _
    // Predicated region
    $region34: #{tpu_custom_call.1} parent=1 // pred_check
      %p387 = pneg %p89
    $region35: #{tpu_custom_call.1} parent=1 // pred_check_branch
      %389 = sbr.rel (%p387) target = $region37
    $region36: #{tpu_custom_call.1} parent=1 // pred_region
      %v390 = vld [vmem:[#allocation2] sm:$0xff]
      %v391 = vld [vmem:[#allocation2 + $0x8] sm:$0xff]
      %v392 = vld [vmem:[#allocation2 + $0x10] sm:$0xff]
      %v393 = vld [vmem:[#allocation2 + $0x18] sm:$0xff]
      %v394 = vld [vmem:[#allocation2 + $0x20] sm:$0xff]
      %v395 = vld [vmem:[#allocation2 + $0x28] sm:$0xff]
      %v396 = vld [vmem:[#allocation2 + $0x30] sm:$0xff]
      %v397 = vld [vmem:[#allocation2 + $0x38] sm:$0xff]
      %v398 = vld [vmem:[#allocation2 + $0x40] sm:$0xff]
      %v399 = vld [vmem:[#allocation2 + $0x48] sm:$0xff]
      %v400 = vld [vmem:[#allocation2 + $0x50] sm:$0xff]
      %v401 = vld [vmem:[#allocation2 + $0x58] sm:$0xff]
      %v402 = vld [vmem:[#allocation2 + $0x60] sm:$0xff]
      %v403 = vld [vmem:[#allocation2 + $0x68] sm:$0xff]
      %v404 = vld [vmem:[#allocation2 + $0x70] sm:$0xff]
      %v405 = vld [vmem:[#allocation2 + $0x78] sm:$0xff]
      %v406 = vpack.c.bf16 %v391, %v390
      %v407 = vpack.c.bf16 %v393, %v392
      %v408 = vpack.c.bf16 %v395, %v394
      %v409 = vpack.c.bf16 %v397, %v396
      %v410 = vpack.c.bf16 %v399, %v398
      %v411 = vpack.c.bf16 %v401, %v400
      %v412 = vpack.c.bf16 %v403, %v402
      %v413 = vpack.c.bf16 %v405, %v404
      %v414 = vld [vmem:[#allocation6] sm:$0xf]
      %v415 = vld [vmem:[#allocation6 + $0x4] sm:$0xf]
      %v416 = vld [vmem:[#allocation6 + $0x8] sm:$0xf]
      %v417 = vld [vmem:[#allocation6 + $0xc] sm:$0xf]
      %v418 = vld [vmem:[#allocation6 + $0x10] sm:$0xf]
      %v419 = vld [vmem:[#allocation6 + $0x14] sm:$0xf]
      %v420 = vld [vmem:[#allocation6 + $0x18] sm:$0xf]
      %v421 = vld [vmem:[#allocation6 + $0x1c] sm:$0xf]
      %v422 = vld [vmem:[#allocation6 + $0x20] sm:$0xf]
      %v423 = vld [vmem:[#allocation6 + $0x24] sm:$0xf]
      %v424 = vld [vmem:[#allocation6 + $0x28] sm:$0xf]
      %v425 = vld [vmem:[#allocation6 + $0x2c] sm:$0xf]
      %v426 = vld [vmem:[#allocation6 + $0x30] sm:$0xf]
      %v427 = vld [vmem:[#allocation6 + $0x34] sm:$0xf]
      %v428 = vld [vmem:[#allocation6 + $0x38] sm:$0xf]
      %v429 = vld [vmem:[#allocation6 + $0x3c] sm:$0xf]
      %v446 = vunpack.c.l.b16 %v414
      %v447 = vunpack.c.l.b16 %v415
      %v448 = vunpack.c.l.b16 %v416
      %v449 = vunpack.c.l.b16 %v417
      %v450 = vunpack.c.l.b16 %v418
      %v451 = vunpack.c.l.b16 %v419
      %v452 = vunpack.c.l.b16 %v420
      %v453 = vunpack.c.l.b16 %v421
      %v454 = vunpack.c.l.b16 %v422
      %v455 = vunpack.c.l.b16 %v423
      %v456 = vunpack.c.l.b16 %v424
      %v457 = vunpack.c.l.b16 %v425
      %v458 = vunpack.c.l.b16 %v426
      %v459 = vunpack.c.l.b16 %v427
      %v460 = vunpack.c.l.b16 %v428
      %v461 = vunpack.c.l.b16 %v429
      %v462 = vpack.c.b16 %v447, %v446
      %v463 = vpack.c.b16 %v449, %v448
      %v464 = vpack.c.b16 %v451, %v450
      %v465 = vpack.c.b16 %v453, %v452
      %v466 = vpack.c.b16 %v455, %v454
      %v467 = vpack.c.b16 %v457, %v456
      %v468 = vpack.c.b16 %v459, %v458
      %v469 = vpack.c.b16 %v461, %v460
      %478 = vmatprep.subr.bf16.mxu0 0
      %479 = vmatpush1.bf16.msra.mxu0 %v469
      %480 = vmatprep.subr.bf16.mxu0 0
      %481 = vmatpush1.bf16.msra.mxu0 %v468
      %482 = vmatprep.subr.bf16.mxu0 0
      %483 = vmatpush1.bf16.msra.mxu0 %v467
      %484 = vmatprep.subr.bf16.mxu0 0
      %485 = vmatpush1.bf16.msra.mxu0 %v466
      %486 = vmatprep.subr.bf16.mxu0 0
      %487 = vmatpush1.bf16.msra.mxu0 %v465
      %488 = vmatprep.subr.bf16.mxu0 0
      %489 = vmatpush1.bf16.msra.mxu0 %v464
      %490 = vmatprep.subr.bf16.mxu0 0
      %491 = vmatpush1.bf16.msra.mxu0 %v463
      %492 = vmatprep.subr.bf16.mxu0 0
      %493 = vmatpush1.bf16.msra.mxu0 %v462
      %494 = vmatprep.subr.bf16.mxu0 0
      %495 = vmatpush2.bf16.msra.mxu0 0
      %496 = vmatprep.subr.bf16.mxu0 0
      %497 = vmatpush2.bf16.msra.mxu0 0
      %498 = vmatprep.subr.bf16.mxu0 0
      %499 = vmatpush2.bf16.msra.mxu0 0
      %500 = vmatprep.subr.bf16.mxu0 0
      %501 = vmatpush2.bf16.msra.mxu0 0
      %502 = vmatprep.subr.bf16.mxu0 0
      %503 = vmatpush2.bf16.msra.mxu0 0
      %504 = vmatprep.subr.bf16.mxu0 0
      %505 = vmatpush2.bf16.msra.mxu0 0
      %506 = vmatprep.subr.bf16.mxu0 0
      %507 = vmatpush2.bf16.msra.mxu0 0
      %508 = vmatprep.subr.bf16.mxu0 0
      %509 = vmatpush2.bf16.msra.mxu0 0
      %510 = vmatprep.mubr.bf16.mxu0 0
      %511 = vmatmul.mubr.bf16.gmra.mxu0 %v406
      %v512 = vpop.f32.mrf.mxu0
      %v513 = vadd.f32 0.0, %v512
      %v514 = vpop.f32.mrf.mxu0
      %v515 = vpop.f32.mrf.mxu0
      %v516 = vadd.f32 0.0, %v515
      %v517 = vpop.f32.mrf.mxu0
      %518 = vmatprep.mubr.bf16.mxu0 0
      %519 = vmatmul.mubr.bf16.gmra.mxu0 %v407
      %v520 = vpop.f32.mrf.mxu0
      %v521 = vadd.f32 0.0, %v520
      %v522 = vpop.f32.mrf.mxu0
      %v523 = vpop.f32.mrf.mxu0
      %v524 = vadd.f32 0.0, %v523
      %v525 = vpop.f32.mrf.mxu0
      %526 = vmatprep.mubr.bf16.mxu0 0
      %527 = vmatmul.mubr.bf16.gmra.mxu0 %v408
      %v528 = vpop.f32.mrf.mxu0
      %v529 = vadd.f32 0.0, %v528
      %v530 = vpop.f32.mrf.mxu0
      %v531 = vpop.f32.mrf.mxu0
      %v532 = vadd.f32 0.0, %v531
      %v533 = vpop.f32.mrf.mxu0
      %534 = vmatprep.mubr.bf16.mxu0 0
      %535 = vmatmul.mubr.bf16.gmra.mxu0 %v409
      %v536 = vpop.f32.mrf.mxu0
      %v537 = vadd.f32 0.0, %v536
      %v538 = vpop.f32.mrf.mxu0
      %v539 = vpop.f32.mrf.mxu0
      %v540 = vadd.f32 0.0, %v539
      %v541 = vpop.f32.mrf.mxu0
      %542 = vmatprep.mubr.bf16.mxu0 0
      %543 = vmatmul.mubr.bf16.gmra.mxu0 %v410
      %v544 = vpop.f32.mrf.mxu0
      %v545 = vadd.f32 0.0, %v544
      %v546 = vpop.f32.mrf.mxu0
      %v547 = vpop.f32.mrf.mxu0
      %v548 = vadd.f32 0.0, %v547
      %v549 = vpop.f32.mrf.mxu0
      %550 = vmatprep.mubr.bf16.mxu0 0
      %551 = vmatmul.mubr.bf16.gmra.mxu0 %v411
      %v552 = vpop.f32.mrf.mxu0
      %v553 = vadd.f32 0.0, %v552
      %v554 = vpop.f32.mrf.mxu0
      %v555 = vpop.f32.mrf.mxu0
      %v556 = vadd.f32 0.0, %v555
      %v557 = vpop.f32.mrf.mxu0
      %558 = vmatprep.mubr.bf16.mxu0 0
      %559 = vmatmul.mubr.bf16.gmra.mxu0 %v412
      %v560 = vpop.f32.mrf.mxu0
      %v561 = vadd.f32 0.0, %v560
      %v562 = vpop.f32.mrf.mxu0
      %v563 = vpop.f32.mrf.mxu0
      %v564 = vadd.f32 0.0, %v563
      %v565 = vpop.f32.mrf.mxu0
      %566 = vmatprep.mubr.bf16.mxu0 0
      %567 = vmatmul.mubr.bf16.gmra.mxu0 %v413
      %v568 = vpop.f32.mrf.mxu0
      %v569 = vadd.f32 0.0, %v568
      %v570 = vpop.f32.mrf.mxu0
      %v571 = vpop.f32.mrf.mxu0
      %v572 = vadd.f32 0.0, %v571
      %v573 = vpop.f32.mrf.mxu0
      %574 = vdwg.mxu0
      %v575 = vld [vmem:[%s5] sm:$0xff]
      %v576 = vld [vmem:[%s5 + $0x8] sm:$0xff]
      %v577 = vld [vmem:[%s5 + $0x10] sm:$0xff]
      %v578 = vld [vmem:[%s5 + $0x18] sm:$0xff]
      %v579 = vld [vmem:[%s5 + $0x20] sm:$0xff]
      %v580 = vld [vmem:[%s5 + $0x28] sm:$0xff]
      %v581 = vld [vmem:[%s5 + $0x30] sm:$0xff]
      %v582 = vld [vmem:[%s5 + $0x38] sm:$0xff]
      %v583 = vld [vmem:[%s5 + $0x40] sm:$0xff]
      %v584 = vld [vmem:[%s5 + $0x48] sm:$0xff]
      %v585 = vld [vmem:[%s5 + $0x50] sm:$0xff]
      %v586 = vld [vmem:[%s5 + $0x58] sm:$0xff]
      %v587 = vld [vmem:[%s5 + $0x60] sm:$0xff]
      %v588 = vld [vmem:[%s5 + $0x68] sm:$0xff]
      %v589 = vld [vmem:[%s5 + $0x70] sm:$0xff]
      %v590 = vld [vmem:[%s5 + $0x78] sm:$0xff]
      %592 = vset.pattern.permute.xlu0 0
      %593 = vperm.xlu0 %592, %v575
      %v594 = vpop.permute.xlu0 %593
      %597 = vset.pattern.permute.xlu0 0
      %598 = vperm.xlu0 %597, %v576
      %v599 = vpop.permute.xlu0 %598
      %602 = vset.pattern.permute.xlu0 0
      %603 = vperm.xlu0 %602, %v577
      %v604 = vpop.permute.xlu0 %603
      %607 = vset.pattern.permute.xlu0 0
      %608 = vperm.xlu0 %607, %v578
      %v609 = vpop.permute.xlu0 %608
      %612 = vset.pattern.permute.xlu0 0
      %613 = vperm.xlu0 %612, %v579
      %v614 = vpop.permute.xlu0 %613
      %617 = vset.pattern.permute.xlu0 0
      %618 = vperm.xlu0 %617, %v580
      %v619 = vpop.permute.xlu0 %618
      %622 = vset.pattern.permute.xlu0 0
      %623 = vperm.xlu0 %622, %v581
      %v624 = vpop.permute.xlu0 %623
      %627 = vset.pattern.permute.xlu0 0
      %628 = vperm.xlu0 %627, %v582
      %v629 = vpop.permute.xlu0 %628
      %632 = vset.pattern.permute.xlu0 0
      %633 = vperm.xlu0 %632, %v583
      %v634 = vpop.permute.xlu0 %633
      %637 = vset.pattern.permute.xlu0 0
      %638 = vperm.xlu0 %637, %v584
      %v639 = vpop.permute.xlu0 %638
      %642 = vset.pattern.permute.xlu0 0
      %643 = vperm.xlu0 %642, %v585
      %v644 = vpop.permute.xlu0 %643
      %647 = vset.pattern.permute.xlu0 0
      %648 = vperm.xlu0 %647, %v586
      %v649 = vpop.permute.xlu0 %648
      %652 = vset.pattern.permute.xlu0 0
      %653 = vperm.xlu0 %652, %v587
      %v654 = vpop.permute.xlu0 %653
      %657 = vset.pattern.permute.xlu0 0
      %658 = vperm.xlu0 %657, %v588
      %v659 = vpop.permute.xlu0 %658
      %662 = vset.pattern.permute.xlu0 0
      %663 = vperm.xlu0 %662, %v589
      %v664 = vpop.permute.xlu0 %663
      %667 = vset.pattern.permute.xlu0 0
      %668 = vperm.xlu0 %667, %v590
      %v669 = vpop.permute.xlu0 %668
      %v671 = vmul.f32 %v513, %v594
      %v672 = vmul.f32 %v516, %v599
      %v673 = vmul.f32 %v521, %v604
      %v674 = vmul.f32 %v524, %v609
      %v675 = vmul.f32 %v529, %v614
      %v676 = vmul.f32 %v532, %v619
      %v677 = vmul.f32 %v537, %v624
      %v678 = vmul.f32 %v540, %v629
      %v679 = vmul.f32 %v545, %v634
      %v680 = vmul.f32 %v548, %v639
      %v681 = vmul.f32 %v553, %v644
      %v682 = vmul.f32 %v556, %v649
      %v683 = vmul.f32 %v561, %v654
      %v684 = vmul.f32 %v564, %v659
      %v685 = vmul.f32 %v569, %v664
      %v686 = vmul.f32 %v572, %v669
      %v687 = vld [vmem:[%s6] sm:$0x1]
      %v689 = vlaneseq
      %v690 = vshrl.u32 %v689, 7
      %v691 = vsub.s32 0, %v690
      %v692 = vrot.slane %v687, %v691
      %v694 = vadd.f32 %v671, %v692
      %v695 = vadd.f32 %v672, %v692
      %v696 = vadd.f32 %v673, %v692
      %v697 = vadd.f32 %v674, %v692
      %v698 = vadd.f32 %v675, %v692
      %v699 = vadd.f32 %v676, %v692
      %v700 = vadd.f32 %v677, %v692
      %v701 = vadd.f32 %v678, %v692
      %v702 = vadd.f32 %v679, %v692
      %v703 = vadd.f32 %v680, %v692
      %v704 = vadd.f32 %v681, %v692
      %v705 = vadd.f32 %v682, %v692
      %v706 = vadd.f32 %v683, %v692
      %v707 = vadd.f32 %v684, %v692
      %v708 = vadd.f32 %v685, %v692
      %v709 = vadd.f32 %v686, %v692
      %v710 = vmax.f32 %v694, 0.0
      %v711 = vmax.f32 %v695, 0.0
      %v712 = vmax.f32 %v696, 0.0
      %v713 = vmax.f32 %v697, 0.0
      %v714 = vmax.f32 %v698, 0.0
      %v715 = vmax.f32 %v699, 0.0
      %v716 = vmax.f32 %v700, 0.0
      %v717 = vmax.f32 %v701, 0.0
      %v718 = vmax.f32 %v702, 0.0
      %v719 = vmax.f32 %v703, 0.0
      %v720 = vmax.f32 %v704, 0.0
      %v721 = vmax.f32 %v705, 0.0
      %v722 = vmax.f32 %v706, 0.0
      %v723 = vmax.f32 %v707, 0.0
      %v724 = vmax.f32 %v708, 0.0
      %v725 = vmax.f32 %v709, 0.0
      %v726 = vpack.c.bf16 %v711, %v710
      %v727 = vpack.c.bf16 %v713, %v712
      %v728 = vpack.c.bf16 %v715, %v714
      %v729 = vpack.c.bf16 %v717, %v716
      %v730 = vpack.c.bf16 %v719, %v718
      %v731 = vpack.c.bf16 %v721, %v720
      %v732 = vpack.c.bf16 %v723, %v722
      %v733 = vpack.c.bf16 %v725, %v724
      %v742 = vunpack.c.l.b16 %v726
      %v743 = vunpack.c.h.b16 %v726
      %v744 = vunpack.c.l.b16 %v727
      %v745 = vunpack.c.h.b16 %v727
      %v746 = vunpack.c.l.b16 %v728
      %v747 = vunpack.c.h.b16 %v728
      %v748 = vunpack.c.l.b16 %v729
      %v749 = vunpack.c.h.b16 %v729
      %v750 = vunpack.c.l.b16 %v730
      %v751 = vunpack.c.h.b16 %v730
      %v752 = vunpack.c.l.b16 %v731
      %v753 = vunpack.c.h.b16 %v731
      %v754 = vunpack.c.l.b16 %v732
      %v755 = vunpack.c.h.b16 %v732
      %v756 = vunpack.c.l.b16 %v733
      %v757 = vunpack.c.h.b16 %v733
      %v758 = vpack.c.b16 %v742, %v742
      %v759 = vpack.c.b16 %v743, %v743
      %v760 = vpack.c.b16 %v744, %v744
      %v761 = vpack.c.b16 %v745, %v745
      %v762 = vpack.c.b16 %v746, %v746
      %v763 = vpack.c.b16 %v747, %v747
      %v764 = vpack.c.b16 %v748, %v748
      %v765 = vpack.c.b16 %v749, %v749
      %v766 = vpack.c.b16 %v750, %v750
      %v767 = vpack.c.b16 %v751, %v751
      %v768 = vpack.c.b16 %v752, %v752
      %v769 = vpack.c.b16 %v753, %v753
      %v770 = vpack.c.b16 %v754, %v754
      %v771 = vpack.c.b16 %v755, %v755
      %v772 = vpack.c.b16 %v756, %v756
      %v773 = vpack.c.b16 %v757, %v757
      %790 = vst [vmem:[#allocation9] sm:$0xf] %v758
      %791 = vst [vmem:[#allocation9 + $0x4] sm:$0xf] %v759
      %792 = vst [vmem:[#allocation9 + $0x8] sm:$0xf] %v760
      %793 = vst [vmem:[#allocation9 + $0xc] sm:$0xf] %v761
      %794 = vst [vmem:[#allocation9 + $0x10] sm:$0xf] %v762
      %795 = vst [vmem:[#allocation9 + $0x14] sm:$0xf] %v763
      %796 = vst [vmem:[#allocation9 + $0x18] sm:$0xf] %v764
      %797 = vst [vmem:[#allocation9 + $0x1c] sm:$0xf] %v765
      %798 = vst [vmem:[#allocation9 + $0x20] sm:$0xf] %v766
      %799 = vst [vmem:[#allocation9 + $0x24] sm:$0xf] %v767
      %800 = vst [vmem:[#allocation9 + $0x28] sm:$0xf] %v768
      %801 = vst [vmem:[#allocation9 + $0x2c] sm:$0xf] %v769
      %802 = vst [vmem:[#allocation9 + $0x30] sm:$0xf] %v770
      %803 = vst [vmem:[#allocation9 + $0x34] sm:$0xf] %v771
      %804 = vst [vmem:[#allocation9 + $0x38] sm:$0xf] %v772
      %805 = vst [vmem:[#allocation9 + $0x3c] sm:$0xf] %v773
    $region37: #{tpu_custom_call.1} parent=1 // pred_fallthru
      _
    // Predicated region
    $region38: #{tpu_custom_call.1} parent=1 // pred_check
      _
    $region39: #{tpu_custom_call.1} parent=1 // pred_check_branch
      %807 = sbr.rel (0) target = $region41
    $region40: #{tpu_custom_call.1} parent=1 // pred_region
      %s809 = ssub.s32 1024, 1024
      %810 = vsyncadd [#allocation8], %s809
      %s811 = sshll.u32 [#allocation9], 4
      %s812 = int_to_ptr.vmem [resolvable:$true] %s811
      %817 = dma.vmem_to_hbm [thread:$0]  %s812, 1024, %s7, [#allocation8], 64, 64, 4
    $region41: #{tpu_custom_call.1} parent=1 // pred_fallthru
      _
    // Predicated region
    $region42: #{tpu_custom_call.1} parent=1 // pred_check
      _
    $region43: #{tpu_custom_call.1} parent=1 // pred_check_branch
      %819 = sbr.rel (0) target = $region45
    $region44: #{tpu_custom_call.1} parent=1 // pred_region
      %820 = dma.done [#allocation8], 1024
    $region45: #{tpu_custom_call.1} parent=1 // pred_fallthru
      _
    %821 = vsyncpa [#allocation7], 1
    %822 = vsyncpa [#allocation8], 1

</llo_original>
